<compile_context>
chip_gen: v5e
topology: v5e:2x2
jax: 0.10.0
libtpu: 0.0.40
codegen_flags: <defaults>
</compile_context>

<pallas_src>
import jax
import jax.numpy as jnp
from jax.experimental import pallas as pl
from jax.experimental.pallas import tpu as pltpu

# ---------------- config (small, consistent with a POS tagger) ----------------
B, S = 2, 8
N = B * S
VOCAB_WORD, D_WORD = 50, 16
VOCAB_CHAR, D_CHAR, L_CHAR = 30, 8, 6
VOCAB_CLUSTER, D_CLUSTER = 20, 8
D_ELMO = 32
D_IN = D_WORD + D_CHAR + D_CLUSTER + D_ELMO        # 64
H = 32
C_UPOS = 18                                        # class 0 = padding label
C_XPOS = 24                                        # class 0 = padding label
N_MODELS = 3

# packed / padded layout constants
W_WORD = 64                                        # word one-hot slab   (>= VOCAB_WORD)
W_CHAR = 32                                        # char one-hot slab   (>= VOCAB_CHAR)
W_CLUS = 32                                        # cluster one-hot slab(>= VOCAB_CLUSTER)
X_DIM = W_WORD + W_CHAR + W_CLUS + D_ELMO + 1      # 161 (ones column carries enc bias)
H_ALL = N_MODELS * H                               # 96  (all models' hidden, side by side)
C_PAD = 128                                        # each head padded to one full lane slab
SLAB = 2 * C_PAD                                   # 256 per model: [upos(128) | xpos(128)]
C_ALL = N_MODELS * SLAB                            # 768
NEG = -1e9                                         # padded-class bias -> exp() == 0
N_IDS = 2 + L_CHAR                                 # [word, cluster, char_0..char_5]


# --------------------------------- kernel -------------------------------------
def _softmax_slab(logits):
    # softmax over one 128-lane slab; padded lanes carry logit = NEG -> prob 0.
    z = logits - jnp.max(logits, axis=-1, keepdims=True)
    e = jnp.exp(z)
    return e * pl.reciprocal(jnp.sum(e, axis=-1, keepdims=True), approx=True)


def _argmax_skip0(acc):
    # torch.max(probs[:, :, 1:], 2) followed by add_(1): index into the FULL
    # class axis of the first max among classes >= 1.  Padded classes have
    # prob exactly 0 < any real class prob, so they are never selected.
    c = acc.shape[-1]
    col = jax.lax.broadcasted_iota(jnp.int32, acc.shape, 1)
    masked = jnp.where(col >= 1, acc, -jnp.inf)
    mx = jnp.max(masked, axis=-1, keepdims=True)
    hit = masked == mx
    idx = jnp.min(jnp.where(hit, col, c), axis=-1, keepdims=True)
    return idx.astype(jnp.int32)                               # (N, 1)


def _ensemble_kernel(ids_ref, elmo_ref, wenc_ref, wcls_ref, out_ref):
    # ids_ref  : (N, N_IDS)  int32   [word, cluster, chars...]
    # elmo_ref : (N, D_ELMO) f32
    # wenc_ref : (X_DIM, H_ALL) f32  (embedding tables + enc bias pre-folded)
    # wcls_ref : (H_ALL + 1, C_ALL) f32  (block-diag heads + bias row, lane-padded)
    # out_ref  : (N, 2) int32        col 0 = upos, col 1 = xpos
    ids = ids_ref[...]

    # one-hot features built on the VPU (no gather); padded vocab lanes stay 0.
    word_oh = (ids[:, 0:1] ==
               jax.lax.broadcasted_iota(jnp.int32, (N, W_WORD), 1)).astype(jnp.float32)
    clus_oh = (ids[:, 1:2] ==
               jax.lax.broadcasted_iota(jnp.int32, (N, W_CLUS), 1)).astype(jnp.float32)
    ciota = jax.lax.broadcasted_iota(jnp.int32, (N, W_CHAR), 1)
    char_cnt = jnp.zeros((N, W_CHAR), jnp.float32)
    for l in range(L_CHAR):                                    # static unroll, tiny
        char_cnt = char_cnt + (ids[:, 2 + l:3 + l] == ciota).astype(jnp.float32)
    char_oh = char_cnt * (1.0 / L_CHAR)                        # mean-pooled one-hot

    ones = jnp.ones((N, 1), jnp.float32)
    x = jnp.concatenate([word_oh, char_oh, clus_oh, elmo_ref[...], ones], axis=-1)

    # single fused encoder matmul for all 3 models (shared LHS).
    h = jnp.tanh(jnp.dot(x, wenc_ref[...], preferred_element_type=jnp.float32))   # (N, H_ALL)
    h_aug = jnp.concatenate([h, ones], axis=-1)                                    # (N, H_ALL+1)

    # single block-diagonal classifier matmul for all 3 models x 2 heads.
    logits = jnp.dot(h_aug, wcls_ref[...], preferred_element_type=jnp.float32)     # (N, C_ALL)

    up_acc = jnp.zeros((N, C_PAD), jnp.float32)
    xp_acc = jnp.zeros((N, C_PAD), jnp.float32)
    for m in range(N_MODELS):                                  # static unroll, vreg accumulators
        base = m * SLAB                                        # 128-aligned slab slices
        up_acc = up_acc + _softmax_slab(logits[:, base:base + C_PAD])
        xp_acc = xp_acc + _softmax_slab(logits[:, base + C_PAD:base + SLAB])

    # single packed store: column 0 = upos, column 1 = xpos
    out_ref[...] = jnp.concatenate(
        [_argmax_skip0(up_acc), _argmax_skip0(xp_acc)], axis=-1)


# ------------------------------ glue / wrapper ---------------------------------
def make_params(key):
    params = []
    for i in range(N_MODELS):
        ks = jax.random.split(jax.random.fold_in(key, i), 9)
        params.append(dict(
            emb_word=0.1 * jax.random.normal(ks[0], (VOCAB_WORD, D_WORD), jnp.float32),
            emb_char=0.1 * jax.random.normal(ks[1], (VOCAB_CHAR, D_CHAR), jnp.float32),
            emb_cluster=0.1 * jax.random.normal(ks[2], (VOCAB_CLUSTER, D_CLUSTER), jnp.float32),
            w_enc=0.1 * jax.random.normal(ks[3], (D_IN, H), jnp.float32),
            b_enc=0.1 * jax.random.normal(ks[4], (1, H), jnp.float32),
            w_upos=0.1 * jax.random.normal(ks[5], (H, C_UPOS), jnp.float32),
            b_upos=0.1 * jax.random.normal(ks[6], (1, C_UPOS), jnp.float32),
            w_xpos=0.1 * jax.random.normal(ks[7], (H, C_XPOS), jnp.float32),
            b_xpos=0.1 * jax.random.normal(ks[8], (1, C_XPOS), jnp.float32),
        ))
    return params


def _pack_inputs(word_inp, chars_package, elmo, cluster_inp):
    ids = jnp.concatenate(
        [word_inp.reshape(N, 1), cluster_inp.reshape(N, 1),
         chars_package.reshape(N, L_CHAR)], axis=1).astype(jnp.int32)   # (N, N_IDS)
    return ids, elmo.reshape(N, D_ELMO).astype(jnp.float32)


def _pack_weights(params):
    # Fold embedding tables + biases into two packed weight slabs (trace-time XLA ops).
    enc_cols, cls_blocks, bias_rows = [], [], []
    for p in params:
        a_word = p["emb_word"] @ p["w_enc"][:D_WORD]                                  # (V_w, H)
        a_char = p["emb_char"] @ p["w_enc"][D_WORD:D_WORD + D_CHAR]                   # (V_c, H)
        a_clus = p["emb_cluster"] @ p["w_enc"][D_WORD + D_CHAR:D_WORD + D_CHAR + D_CLUSTER]
        a_elmo = p["w_enc"][D_WORD + D_CHAR + D_CLUSTER:]                             # (D_ELMO, H)
        enc_cols.append(jnp.concatenate([
            jnp.pad(a_word, ((0, W_WORD - VOCAB_WORD), (0, 0))),
            jnp.pad(a_char, ((0, W_CHAR - VOCAB_CHAR), (0, 0))),
            jnp.pad(a_clus, ((0, W_CLUS - VOCAB_CLUSTER), (0, 0))),
            a_elmo,
            p["b_enc"],
        ], axis=0))                                                                   # (X_DIM, H)
        cls_blocks.append(jnp.concatenate([
            p["w_upos"], jnp.zeros((H, C_PAD - C_UPOS), jnp.float32),
            p["w_xpos"], jnp.zeros((H, C_PAD - C_XPOS), jnp.float32)], axis=1))       # (H, SLAB)
        bias_rows.append(jnp.concatenate([
            p["b_upos"], jnp.full((1, C_PAD - C_UPOS), NEG, jnp.float32),
            p["b_xpos"], jnp.full((1, C_PAD - C_XPOS), NEG, jnp.float32)], axis=1))   # (1, SLAB)

    w_enc_all = jnp.concatenate(enc_cols, axis=1)                                     # (X_DIM, H_ALL)
    blocks_padded = [
        jnp.pad(cls_blocks[m], ((0, 0), (m * SLAB, (N_MODELS - 1 - m) * SLAB)))
        for m in range(N_MODELS)]                                                     # block-diag
    w_cls_all = jnp.concatenate(
        [jnp.concatenate(blocks_padded, axis=0),                                      # (H_ALL, C_ALL)
         jnp.concatenate(bias_rows, axis=1)], axis=0)                                 # (H_ALL+1, C_ALL)
    return w_enc_all, w_cls_all


@jax.jit
def ensemble_forward(params, word_inp, chars_package, elmo, cluster_inp, y=None):
    ids, elmo2d = _pack_inputs(word_inp, chars_package, elmo, cluster_inp)
    w_enc_all, w_cls_all = _pack_weights(params)

    vmem = pl.BlockSpec(memory_space=pltpu.MemorySpace.VMEM)
    bytes_accessed = 4 * (ids.size + elmo2d.size + w_enc_all.size + w_cls_all.size + N * 2)
    packed = pl.pallas_call(
        _ensemble_kernel,
        out_shape=jax.ShapeDtypeStruct((N, 2), jnp.int32),
        in_specs=[vmem, vmem, vmem, vmem],
        out_specs=vmem,
        cost_estimate=pl.CostEstimate(
            flops=2 * N * (X_DIM * H_ALL + (H_ALL + 1) * C_ALL),
            transcendentals=N * (H_ALL + C_ALL + 2 * N_MODELS),
            bytes_accessed=bytes_accessed),
    )(ids, elmo2d, w_enc_all, w_cls_all)

    upos_result = packed[:, 0].reshape(B, S)   # int32 (torch returns int64)
    xpos_result = packed[:, 1].reshape(B, S)
    return (upos_result, xpos_result), jnp.zeros((1,), jnp.float32)


# ------------------------------ pure-JAX reference ------------------------------
def _encoder_features(p, word_inp, chars_package, elmo, cluster_inp):
    w = p["emb_word"][word_inp]                         # (B, S, D_WORD)
    c = jnp.mean(p["emb_char"][chars_package], axis=2)  # (B, S, D_CHAR)
    cl = p["emb_cluster"][cluster_inp]                  # (B, S, D_CLUSTER)
    feats = jnp.concatenate([w, c, cl, elmo], axis=-1)  # (B, S, D_IN)
    return feats.reshape(N, D_IN).astype(jnp.float32)


def _reference(params, word_inp, chars_package, elmo, cluster_inp):
    up_acc = jnp.zeros((N, C_UPOS), jnp.float32)
    xp_acc = jnp.zeros((N, C_XPOS), jnp.float32)
    for p in params:
        feats = _encoder_features(p, word_inp, chars_package, elmo, cluster_inp)
        h = jnp.tanh(feats @ p["w_enc"] + p["b_enc"])
        up_acc += jax.nn.softmax(h @ p["w_upos"] + p["b_upos"], axis=-1)
        xp_acc += jax.nn.softmax(h @ p["w_xpos"] + p["b_xpos"], axis=-1)
    up_acc /= N_MODELS
    xp_acc /= N_MODELS
    upos = jnp.argmax(up_acc[:, 1:], axis=-1).astype(jnp.int32) + 1
    xpos = jnp.argmax(xp_acc[:, 1:], axis=-1).astype(jnp.int32) + 1
    return upos.reshape(B, S), xpos.reshape(B, S)


if __name__ == "__main__":
    key = jax.random.PRNGKey(0)
    k_w, k_c, k_e, k_cl, k_p = jax.random.split(key, 5)

    word_inp = jax.random.randint(k_w, (B, S), 0, VOCAB_WORD, jnp.int32)
    chars_package = jax.random.randint(k_c, (B, S, L_CHAR), 0, VOCAB_CHAR, jnp.int32)
    elmo = jax.random.normal(k_e, (B, S, D_ELMO), jnp.float32)
    cluster_inp = jax.random.randint(k_cl, (B, S), 0, VOCAB_CLUSTER, jnp.int32)
    y = jnp.zeros((B, S), jnp.int32)   # unused by forward (loss is constant 0.0)

    params = make_params(k_p)

    (upos_result, xpos_result), loss = ensemble_forward(
        params, word_inp, chars_package, elmo, cluster_inp, y)
    jax.block_until_ready((upos_result, xpos_result, loss))

    ref_u, ref_x = _reference(params, word_inp, chars_package, elmo, cluster_inp)
    assert upos_result.shape == (B, S) and xpos_result.shape == (B, S)
    assert bool(jnp.all(upos_result == ref_u)), "upos mismatch vs reference"
    assert bool(jnp.all(xpos_result == ref_x)), "xpos mismatch vs reference"
    assert float(loss[0]) == 0.0

    print("KERNEL_OK")
</pallas_src>

<mosaic_0001>
module attributes {stable_mosaic.version = 11 : i64} {
  func.func @_ensemble_kernel(%arg0: memref<16x8xi32, #tpu.memory_space<vmem>>, %arg1: memref<16x32xf32, #tpu.memory_space<vmem>>, %arg2: memref<161x96xf32, #tpu.memory_space<vmem>>, %arg3: memref<97x768xf32, #tpu.memory_space<vmem>>, %arg4: memref<16x2xi32, #tpu.memory_space<vmem>>) attributes {dimension_semantics = [], scalar_prefetch = 0 : i64, scratch_operands = 0 : i64, tpu.core_type = #tpu.core_type<tc>} {
    %c0 = arith.constant 0 : index
    %c0_0 = arith.constant 0 : index
    %0 = vector.load %arg0[%c0, %c0_0] : memref<16x8xi32, #tpu.memory_space<vmem>>, vector<16x8xi32>
    %1 = vector.extract_strided_slice %0 {offsets = [0, 0], sizes = [16, 1], strides = [1, 1]} : vector<16x8xi32> to vector<16x1xi32>
    %2 = tpu.iota {dimensions = array<i32: 1>} : vector<16x64xi32>
    %3 = vector.broadcast %1 : vector<16x1xi32> to vector<16x64xi32>
    %4 = arith.cmpi eq, %3, %2 : vector<16x64xi32>
    %5 = arith.extui %4 : vector<16x64xi1> to vector<16x64xi32>
    %6 = arith.sitofp %5 : vector<16x64xi32> to vector<16x64xf32>
    %7 = vector.extract_strided_slice %0 {offsets = [0, 1], sizes = [16, 1], strides = [1, 1]} : vector<16x8xi32> to vector<16x1xi32>
    %8 = tpu.iota {dimensions = array<i32: 1>} : vector<16x32xi32>
    %9 = vector.broadcast %7 : vector<16x1xi32> to vector<16x32xi32>
    %10 = arith.cmpi eq, %9, %8 : vector<16x32xi32>
    %11 = arith.extui %10 : vector<16x32xi1> to vector<16x32xi32>
    %12 = arith.sitofp %11 : vector<16x32xi32> to vector<16x32xf32>
    %13 = tpu.iota {dimensions = array<i32: 1>} : vector<16x32xi32>
    %cst = arith.constant 0.000000e+00 : f32
    %14 = vector.broadcast %cst : f32 to vector<16x32xf32>
    %15 = vector.extract_strided_slice %0 {offsets = [0, 2], sizes = [16, 1], strides = [1, 1]} : vector<16x8xi32> to vector<16x1xi32>
    %16 = vector.broadcast %15 : vector<16x1xi32> to vector<16x32xi32>
    %17 = arith.cmpi eq, %16, %13 : vector<16x32xi32>
    %18 = arith.extui %17 : vector<16x32xi1> to vector<16x32xi32>
    %19 = arith.sitofp %18 : vector<16x32xi32> to vector<16x32xf32>
    %20 = arith.addf %14, %19 : vector<16x32xf32>
    %21 = vector.extract_strided_slice %0 {offsets = [0, 3], sizes = [16, 1], strides = [1, 1]} : vector<16x8xi32> to vector<16x1xi32>
    %22 = vector.broadcast %21 : vector<16x1xi32> to vector<16x32xi32>
    %23 = arith.cmpi eq, %22, %13 : vector<16x32xi32>
    %24 = arith.extui %23 : vector<16x32xi1> to vector<16x32xi32>
    %25 = arith.sitofp %24 : vector<16x32xi32> to vector<16x32xf32>
    %26 = arith.addf %20, %25 : vector<16x32xf32>
    %27 = vector.extract_strided_slice %0 {offsets = [0, 4], sizes = [16, 1], strides = [1, 1]} : vector<16x8xi32> to vector<16x1xi32>
    %28 = vector.broadcast %27 : vector<16x1xi32> to vector<16x32xi32>
    %29 = arith.cmpi eq, %28, %13 : vector<16x32xi32>
    %30 = arith.extui %29 : vector<16x32xi1> to vector<16x32xi32>
    %31 = arith.sitofp %30 : vector<16x32xi32> to vector<16x32xf32>
    %32 = arith.addf %26, %31 : vector<16x32xf32>
    %33 = vector.extract_strided_slice %0 {offsets = [0, 5], sizes = [16, 1], strides = [1, 1]} : vector<16x8xi32> to vector<16x1xi32>
    %34 = vector.broadcast %33 : vector<16x1xi32> to vector<16x32xi32>
    %35 = arith.cmpi eq, %34, %13 : vector<16x32xi32>
    %36 = arith.extui %35 : vector<16x32xi1> to vector<16x32xi32>
    %37 = arith.sitofp %36 : vector<16x32xi32> to vector<16x32xf32>
    %38 = arith.addf %32, %37 : vector<16x32xf32>
    %39 = vector.extract_strided_slice %0 {offsets = [0, 6], sizes = [16, 1], strides = [1, 1]} : vector<16x8xi32> to vector<16x1xi32>
    %40 = vector.broadcast %39 : vector<16x1xi32> to vector<16x32xi32>
    %41 = arith.cmpi eq, %40, %13 : vector<16x32xi32>
    %42 = arith.extui %41 : vector<16x32xi1> to vector<16x32xi32>
    %43 = arith.sitofp %42 : vector<16x32xi32> to vector<16x32xf32>
    %44 = arith.addf %38, %43 : vector<16x32xf32>
    %45 = vector.extract_strided_slice %0 {offsets = [0, 7], sizes = [16, 1], strides = [1, 1]} : vector<16x8xi32> to vector<16x1xi32>
    %46 = vector.broadcast %45 : vector<16x1xi32> to vector<16x32xi32>
    %47 = arith.cmpi eq, %46, %13 : vector<16x32xi32>
    %48 = arith.extui %47 : vector<16x32xi1> to vector<16x32xi32>
    %49 = arith.sitofp %48 : vector<16x32xi32> to vector<16x32xf32>
    %50 = arith.addf %44, %49 : vector<16x32xf32>
    %cst_1 = arith.constant 0.166666672 : f32
    %51 = vector.broadcast %cst_1 : f32 to vector<16x32xf32>
    %52 = arith.mulf %50, %51 : vector<16x32xf32>
    %cst_2 = arith.constant 1.000000e+00 : f32
    %53 = vector.broadcast %cst_2 : f32 to vector<16x1xf32>
    %c0_3 = arith.constant 0 : index
    %c0_4 = arith.constant 0 : index
    %54 = vector.load %arg1[%c0_3, %c0_4] : memref<16x32xf32, #tpu.memory_space<vmem>>, vector<16x32xf32>
    %55 = tpu.concatenate %6, %52, %12, %54, %53 in 1 : vector<16x64xf32>, vector<16x32xf32>, vector<16x32xf32>, vector<16x32xf32>, vector<16x1xf32> -> vector<16x161xf32>
    %c0_5 = arith.constant 0 : index
    %c0_6 = arith.constant 0 : index
    %56 = vector.load %arg2[%c0_5, %c0_6] : memref<161x96xf32, #tpu.memory_space<vmem>>, vector<161x96xf32>
    %cst_7 = arith.constant dense<0.000000e+00> : vector<16x96xf32>
    %57 = tpu.matmul %55, %56, %cst_7 {dimension_numbers = #tpu.dot_dimension_numbers<[1], [0], [0], [1], [0, 0, 1, 1], [], []>} : vector<16x161xf32>, vector<161x96xf32>, vector<16x96xf32> -> vector<16x96xf32>
    %58 = math.tanh %57 : vector<16x96xf32>
    %59 = tpu.concatenate %58, %53 in 1 : vector<16x96xf32>, vector<16x1xf32> -> vector<16x97xf32>
    %c0_8 = arith.constant 0 : index
    %c0_9 = arith.constant 0 : index
    %60 = vector.load %arg3[%c0_8, %c0_9] : memref<97x768xf32, #tpu.memory_space<vmem>>, vector<97x768xf32>
    %cst_10 = arith.constant dense<0.000000e+00> : vector<16x768xf32>
    %61 = tpu.matmul %59, %60, %cst_10 {dimension_numbers = #tpu.dot_dimension_numbers<[1], [0], [0], [1], [0, 0, 1, 1], [], []>} : vector<16x97xf32>, vector<97x768xf32>, vector<16x768xf32> -> vector<16x768xf32>
    %cst_11 = arith.constant 0.000000e+00 : f32
    %62 = vector.broadcast %cst_11 : f32 to vector<16x128xf32>
    %cst_12 = arith.constant 0.000000e+00 : f32
    %63 = vector.broadcast %cst_12 : f32 to vector<16x128xf32>
    %64 = vector.extract_strided_slice %61 {offsets = [0, 0], sizes = [16, 128], strides = [1, 1]} : vector<16x768xf32> to vector<16x128xf32>
    %cst_13 = arith.constant dense<0xFF800000> : vector<16xf32>
    %65 = vector.multi_reduction <maximumf>, %64, %cst_13 [1] : vector<16x128xf32> to vector<16xf32>
    %66 = vector.shape_cast %65 : vector<16xf32> to vector<16x1xf32>
    %67 = vector.broadcast %66 : vector<16x1xf32> to vector<16x128xf32>
    %68 = arith.subf %64, %67 : vector<16x128xf32>
    %69 = math.exp %68 : vector<16x128xf32>
    %cst_14 = arith.constant dense<0.000000e+00> : vector<16xf32>
    %70 = vector.multi_reduction <add>, %69, %cst_14 [1] : vector<16x128xf32> to vector<16xf32>
    %71 = vector.shape_cast %70 : vector<16xf32> to vector<16x1xf32>
    %72 = tpu.reciprocal %71 {approx = true} : vector<16x1xf32> -> vector<16x1xf32>
    %73 = vector.broadcast %72 : vector<16x1xf32> to vector<16x128xf32>
    %74 = arith.mulf %69, %73 : vector<16x128xf32>
    %75 = arith.addf %62, %74 : vector<16x128xf32>
    %76 = vector.extract_strided_slice %61 {offsets = [0, 128], sizes = [16, 128], strides = [1, 1]} : vector<16x768xf32> to vector<16x128xf32>
    %cst_15 = arith.constant dense<0xFF800000> : vector<16xf32>
    %77 = vector.multi_reduction <maximumf>, %76, %cst_15 [1] : vector<16x128xf32> to vector<16xf32>
    %78 = vector.shape_cast %77 : vector<16xf32> to vector<16x1xf32>
    %79 = vector.broadcast %78 : vector<16x1xf32> to vector<16x128xf32>
    %80 = arith.subf %76, %79 : vector<16x128xf32>
    %81 = math.exp %80 : vector<16x128xf32>
    %cst_16 = arith.constant dense<0.000000e+00> : vector<16xf32>
    %82 = vector.multi_reduction <add>, %81, %cst_16 [1] : vector<16x128xf32> to vector<16xf32>
    %83 = vector.shape_cast %82 : vector<16xf32> to vector<16x1xf32>
    %84 = tpu.reciprocal %83 {approx = true} : vector<16x1xf32> -> vector<16x1xf32>
    %85 = vector.broadcast %84 : vector<16x1xf32> to vector<16x128xf32>
    %86 = arith.mulf %81, %85 : vector<16x128xf32>
    %87 = arith.addf %63, %86 : vector<16x128xf32>
    %88 = vector.extract_strided_slice %61 {offsets = [0, 256], sizes = [16, 128], strides = [1, 1]} : vector<16x768xf32> to vector<16x128xf32>
    %cst_17 = arith.constant dense<0xFF800000> : vector<16xf32>
    %89 = vector.multi_reduction <maximumf>, %88, %cst_17 [1] : vector<16x128xf32> to vector<16xf32>
    %90 = vector.shape_cast %89 : vector<16xf32> to vector<16x1xf32>
    %91 = vector.broadcast %90 : vector<16x1xf32> to vector<16x128xf32>
    %92 = arith.subf %88, %91 : vector<16x128xf32>
    %93 = math.exp %92 : vector<16x128xf32>
    %cst_18 = arith.constant dense<0.000000e+00> : vector<16xf32>
    %94 = vector.multi_reduction <add>, %93, %cst_18 [1] : vector<16x128xf32> to vector<16xf32>
    %95 = vector.shape_cast %94 : vector<16xf32> to vector<16x1xf32>
    %96 = tpu.reciprocal %95 {approx = true} : vector<16x1xf32> -> vector<16x1xf32>
    %97 = vector.broadcast %96 : vector<16x1xf32> to vector<16x128xf32>
    %98 = arith.mulf %93, %97 : vector<16x128xf32>
    %99 = arith.addf %75, %98 : vector<16x128xf32>
    %100 = vector.extract_strided_slice %61 {offsets = [0, 384], sizes = [16, 128], strides = [1, 1]} : vector<16x768xf32> to vector<16x128xf32>
    %cst_19 = arith.constant dense<0xFF800000> : vector<16xf32>
    %101 = vector.multi_reduction <maximumf>, %100, %cst_19 [1] : vector<16x128xf32> to vector<16xf32>
    %102 = vector.shape_cast %101 : vector<16xf32> to vector<16x1xf32>
    %103 = vector.broadcast %102 : vector<16x1xf32> to vector<16x128xf32>
    %104 = arith.subf %100, %103 : vector<16x128xf32>
    %105 = math.exp %104 : vector<16x128xf32>
    %cst_20 = arith.constant dense<0.000000e+00> : vector<16xf32>
    %106 = vector.multi_reduction <add>, %105, %cst_20 [1] : vector<16x128xf32> to vector<16xf32>
    %107 = vector.shape_cast %106 : vector<16xf32> to vector<16x1xf32>
    %108 = tpu.reciprocal %107 {approx = true} : vector<16x1xf32> -> vector<16x1xf32>
    %109 = vector.broadcast %108 : vector<16x1xf32> to vector<16x128xf32>
    %110 = arith.mulf %105, %109 : vector<16x128xf32>
    %111 = arith.addf %87, %110 : vector<16x128xf32>
    %112 = vector.extract_strided_slice %61 {offsets = [0, 512], sizes = [16, 128], strides = [1, 1]} : vector<16x768xf32> to vector<16x128xf32>
    %cst_21 = arith.constant dense<0xFF800000> : vector<16xf32>
    %113 = vector.multi_reduction <maximumf>, %112, %cst_21 [1] : vector<16x128xf32> to vector<16xf32>
    %114 = vector.shape_cast %113 : vector<16xf32> to vector<16x1xf32>
    %115 = vector.broadcast %114 : vector<16x1xf32> to vector<16x128xf32>
    %116 = arith.subf %112, %115 : vector<16x128xf32>
    %117 = math.exp %116 : vector<16x128xf32>
    %cst_22 = arith.constant dense<0.000000e+00> : vector<16xf32>
    %118 = vector.multi_reduction <add>, %117, %cst_22 [1] : vector<16x128xf32> to vector<16xf32>
    %119 = vector.shape_cast %118 : vector<16xf32> to vector<16x1xf32>
    %120 = tpu.reciprocal %119 {approx = true} : vector<16x1xf32> -> vector<16x1xf32>
    %121 = vector.broadcast %120 : vector<16x1xf32> to vector<16x128xf32>
    %122 = arith.mulf %117, %121 : vector<16x128xf32>
    %123 = arith.addf %99, %122 : vector<16x128xf32>
    %124 = vector.extract_strided_slice %61 {offsets = [0, 640], sizes = [16, 128], strides = [1, 1]} : vector<16x768xf32> to vector<16x128xf32>
    %cst_23 = arith.constant dense<0xFF800000> : vector<16xf32>
    %125 = vector.multi_reduction <maximumf>, %124, %cst_23 [1] : vector<16x128xf32> to vector<16xf32>
    %126 = vector.shape_cast %125 : vector<16xf32> to vector<16x1xf32>
    %127 = vector.broadcast %126 : vector<16x1xf32> to vector<16x128xf32>
    %128 = arith.subf %124, %127 : vector<16x128xf32>
    %129 = math.exp %128 : vector<16x128xf32>
    %cst_24 = arith.constant dense<0.000000e+00> : vector<16xf32>
    %130 = vector.multi_reduction <add>, %129, %cst_24 [1] : vector<16x128xf32> to vector<16xf32>
    %131 = vector.shape_cast %130 : vector<16xf32> to vector<16x1xf32>
    %132 = tpu.reciprocal %131 {approx = true} : vector<16x1xf32> -> vector<16x1xf32>
    %133 = vector.broadcast %132 : vector<16x1xf32> to vector<16x128xf32>
    %134 = arith.mulf %129, %133 : vector<16x128xf32>
    %135 = arith.addf %111, %134 : vector<16x128xf32>
    %136 = tpu.iota {dimensions = array<i32: 1>} : vector<16x128xi32>
    %c1_i32 = arith.constant 1 : i32
    %137 = vector.broadcast %c1_i32 : i32 to vector<16x128xi32>
    %138 = arith.cmpi sge, %136, %137 : vector<16x128xi32>
    %cst_25 = arith.constant 0xFF800000 : f32
    %139 = vector.broadcast %cst_25 : f32 to vector<16x128xf32>
    %140 = arith.select %138, %123, %139 : vector<16x128xi1>, vector<16x128xf32>
    %cst_26 = arith.constant dense<0xFF800000> : vector<16xf32>
    %141 = vector.multi_reduction <maximumf>, %140, %cst_26 [1] : vector<16x128xf32> to vector<16xf32>
    %142 = vector.shape_cast %141 : vector<16xf32> to vector<16x1xf32>
    %143 = vector.broadcast %142 : vector<16x1xf32> to vector<16x128xf32>
    %144 = arith.cmpf oeq, %140, %143 : vector<16x128xf32>
    %c128_i32 = arith.constant 128 : i32
    %145 = vector.broadcast %c128_i32 : i32 to vector<16x128xi32>
    %146 = arith.select %144, %136, %145 : vector<16x128xi1>, vector<16x128xi32>
    %cst_27 = arith.constant dense<2147483647> : vector<16xi32>
    %147 = vector.multi_reduction <minsi>, %146, %cst_27 [1] : vector<16x128xi32> to vector<16xi32>
    %148 = vector.shape_cast %147 : vector<16xi32> to vector<16x1xi32>
    %149 = tpu.iota {dimensions = array<i32: 1>} : vector<16x128xi32>
    %c1_i32_28 = arith.constant 1 : i32
    %150 = vector.broadcast %c1_i32_28 : i32 to vector<16x128xi32>
    %151 = arith.cmpi sge, %149, %150 : vector<16x128xi32>
    %cst_29 = arith.constant 0xFF800000 : f32
    %152 = vector.broadcast %cst_29 : f32 to vector<16x128xf32>
    %153 = arith.select %151, %135, %152 : vector<16x128xi1>, vector<16x128xf32>
    %cst_30 = arith.constant dense<0xFF800000> : vector<16xf32>
    %154 = vector.multi_reduction <maximumf>, %153, %cst_30 [1] : vector<16x128xf32> to vector<16xf32>
    %155 = vector.shape_cast %154 : vector<16xf32> to vector<16x1xf32>
    %156 = vector.broadcast %155 : vector<16x1xf32> to vector<16x128xf32>
    %157 = arith.cmpf oeq, %153, %156 : vector<16x128xf32>
    %c128_i32_31 = arith.constant 128 : i32
    %158 = vector.broadcast %c128_i32_31 : i32 to vector<16x128xi32>
    %159 = arith.select %157, %149, %158 : vector<16x128xi1>, vector<16x128xi32>
    %cst_32 = arith.constant dense<2147483647> : vector<16xi32>
    %160 = vector.multi_reduction <minsi>, %159, %cst_32 [1] : vector<16x128xi32> to vector<16xi32>
    %161 = vector.shape_cast %160 : vector<16xi32> to vector<16x1xi32>
    %162 = tpu.concatenate %148, %161 in 1 : vector<16x1xi32>, vector<16x1xi32> -> vector<16x2xi32>
    %c0_33 = arith.constant 0 : index
    %c0_34 = arith.constant 0 : index
    %163 = vector.load %arg4[%c0_33, %c0_34] : memref<16x2xi32, #tpu.memory_space<vmem>>, vector<16x2xi32>
    tpu.vector_store %arg4[%c0_33, %c0_34], %162 {strides = array<i32>} : memref<16x2xi32, #tpu.memory_space<vmem>>, vector<16x2xi32>,
    return
  }
}

</mosaic_0001>

<llo_original>
// kernel: squeeze.2
$region0: #{squeeze.2}
  %s0 = inlined_call_operand.vmem [shape: s32[16], index: 0, kind: input, shape index: {}]
  %s1 = inlined_call_operand.hbm [shape: s32[2,8], index: 1, kind: output, shape index: {}]
  $region1: #{squeeze.2} parent=0
    #allocation0 [shape = 'u8[1024]{0}', space=vmem, size = 0x400, scoped, tag = 'operand span for operand 1']
    #allocation1 [shape = 's32[1]{0}', space=sflag, size = 0x4, scoped, tag = 'scoped memory for squeeze.2']
    #allocation2 [shape = 'u8[4096]{0}', space=vmem, size = 0x1000, scoped, tag = 'scoped mem for output reshape']
    #allocation3 [shape = 'u8[4096]{0}', space=vmem, size = 0x1000, scoped, tag = 'scoped mem for input reshape']
    %2 = vsyncpa [#allocation1], 0
    %s4 = ssub.s32 2, 1
    %v5 = vld [vmem:[%s0] sm:%s4]
    %6 = vst [vmem:[#allocation3] sm:%s4] %v5
    %v7 = vld [vmem:[#allocation3] sm:$0x1]
    %vm8 = vcmask 64512
    %9 = vst.msk [vmem:[#allocation2] sm:$0x1] %vm8, %v7
    %v10 = vld [vmem:[#allocation3] sm:$0x1]
    %11 = vrot.lane.b32.xlu0 %v10, 120
    %v12 = vpop.permute.xlu0 %11
    %vm13 = vcmask 64512
    %s14 = scalar_lea.vmem [#allocation2], 1
    %15 = vst.msk [vmem:[%s14] sm:$0x1] %vm13, %v12
    %s17 = ssub.s32 4, 1
    %v18 = vld [vmem:[#allocation2] sm:%s17]
    %s20 = ssub.s32 4, 1
    %21 = vst [vmem:[#allocation0] sm:%s20] %v18
    %23 = vsyncadd [#allocation1], 0
    %s25 = sshll.u32 [#allocation0], 4
    %s26 = int_to_ptr.vmem [resolvable:$true] %s25
    %s27 = sshll.u32 %s1, 4
    %s28 = int_to_ptr.hbm [resolvable:$true] %s27
    %30 = dma.vmem_to_hbm [thread:$0]  %s26, 32, %s28, [#allocation1]
    %32 = dma.done [#allocation1], 32
    %33 = vsyncpa [#allocation1], 1

// kernel: ensemble_forward.1
$region0: #{ensemble_forward.1}
  #allocation0 [shape = 'u32[]', space=smem, size = 0x4, offset = 0x4, fixed_abs, tag = 'smem constant byte address 0x4 - core index']
  #allocation1 [shape = 'u32[72,128]{1,0:T(1,128)}', space=vmem, size = 0x9000, scoped, tag = 'internal scratch']
  %s0 = inlined_call_operand.vmem [shape: s32[16,8], index: 0, kind: input, shape index: {}]
  %s1 = inlined_call_operand.vmem [shape: f32[16,32], index: 1, kind: input, shape index: {}]
  %s2 = inlined_call_operand.vmem [shape: f32[161,96], index: 2, kind: input, shape index: {}]
  %s3 = inlined_call_operand.vmem [shape: f32[97,768], index: 3, kind: input, shape index: {}]
  %s4 = inlined_call_operand.vmem [shape: s32[16,2], index: 4, kind: output, shape index: {}]
  %s5 = sld [smem:[#allocation0]]
  $region26: #{ensemble_forward.1} parent=0
    _
  %s7 = ssub.s32 1, %s5
  %s8 = scalar_select 0, %s7, %s5
  // Predicated region
  $region2: #{ensemble_forward.1} parent=0 // pred_check
    _
  $region3: #{ensemble_forward.1} parent=0 // pred_check_branch
    %10 = sbr.rel (0) target = $region5
  $region4: #{ensemble_forward.1} parent=0 // pred_region
    _
  $region5: #{ensemble_forward.1} parent=0 // pred_fallthru
    _
  // Predicated region
  $region6: #{ensemble_forward.1} parent=0 // pred_check
    _
  $region7: #{ensemble_forward.1} parent=0 // pred_check_branch
    %12 = sbr.rel (0) target = $region9
  $region8: #{ensemble_forward.1} parent=0 // pred_region
    _
  $region9: #{ensemble_forward.1} parent=0 // pred_fallthru
    _
  // Predicated region
  $region10: #{ensemble_forward.1} parent=0 // pred_check
    _
  $region11: #{ensemble_forward.1} parent=0 // pred_check_branch
    %14 = sbr.rel (0) target = $region13
  $region12: #{ensemble_forward.1} parent=0 // pred_region
    _
  $region13: #{ensemble_forward.1} parent=0 // pred_fallthru
    _
  // Predicated region
  $region14: #{ensemble_forward.1} parent=0 // pred_check
    _
  $region15: #{ensemble_forward.1} parent=0 // pred_check_branch
    %16 = sbr.rel (0) target = $region17
  $region16: #{ensemble_forward.1} parent=0 // pred_region
    _
  $region17: #{ensemble_forward.1} parent=0 // pred_fallthru
    _
  %v17 = vld [vmem:[%s0] sm:$0xff]
  %v18 = vld [vmem:[%s0 + $0x8] sm:$0xff]
  %v19 = vlaneseq
  %v20 = vand.u32 %v19, 127
  %21 = vset.pattern.permute.xlu0 0
  %22 = vperm.xlu0 %21, %v17
  %v23 = vpop.permute.xlu0 %22
  %24 = vset.pattern.permute.xlu0 0
  %25 = vperm.xlu0 %24, %v18
  %v26 = vpop.permute.xlu0 %25
  %vm27 = vcmp.eq.s32.totalorder %v23, %v20
  %vm28 = vcmp.eq.s32.totalorder %v26, %v20
  %v29 = vsel %vm27, 1, 0
  %v30 = vsel %vm28, 1, 0
  %v31 = vcvt.s32.f32 %v29
  %v32 = vcvt.s32.f32 %v30
  %33 = vset.pattern.permute.xlu0 1
  %34 = vperm.xlu0 %33, %v17
  %v35 = vpop.permute.xlu0 %34
  %36 = vset.pattern.permute.xlu0 1
  %37 = vperm.xlu0 %36, %v18
  %v38 = vpop.permute.xlu0 %37
  %vm39 = vcmp.eq.s32.totalorder %v35, %v20
  %vm40 = vcmp.eq.s32.totalorder %v38, %v20
  %v41 = vsel %vm39, 1, 0
  %v42 = vsel %vm40, 1, 0
  %v43 = vcvt.s32.f32 %v41
  %v44 = vcvt.s32.f32 %v42
  %45 = vset.pattern.permute.xlu0 2
  %46 = vperm.xlu0 %45, %v17
  %v47 = vpop.permute.xlu0 %46
  %48 = vset.pattern.permute.xlu0 2
  %49 = vperm.xlu0 %48, %v18
  %v50 = vpop.permute.xlu0 %49
  %vm51 = vcmp.eq.s32.totalorder %v47, %v20
  %vm52 = vcmp.eq.s32.totalorder %v50, %v20
  %v53 = vsel %vm51, 1, 0
  %v54 = vsel %vm52, 1, 0
  %v55 = vcvt.s32.f32 %v53
  %v56 = vcvt.s32.f32 %v54
  %v57 = vadd.f32 %v55, 0.0
  %v58 = vadd.f32 %v56, 0.0
  %59 = vset.pattern.permute.xlu0 3
  %60 = vperm.xlu0 %59, %v17
  %v61 = vpop.permute.xlu0 %60
  %62 = vset.pattern.permute.xlu0 3
  %63 = vperm.xlu0 %62, %v18
  %v64 = vpop.permute.xlu0 %63
  %vm65 = vcmp.eq.s32.totalorder %v61, %v20
  %vm66 = vcmp.eq.s32.totalorder %v64, %v20
  %v67 = vsel %vm65, 1, 0
  %v68 = vsel %vm66, 1, 0
  %v69 = vcvt.s32.f32 %v67
  %v70 = vcvt.s32.f32 %v68
  %v71 = vadd.f32 %v57, %v69
  %v72 = vadd.f32 %v58, %v70
  %73 = vset.pattern.permute.xlu0 4
  %74 = vperm.xlu0 %73, %v17
  %v75 = vpop.permute.xlu0 %74
  %76 = vset.pattern.permute.xlu0 4
  %77 = vperm.xlu0 %76, %v18
  %v78 = vpop.permute.xlu0 %77
  %vm79 = vcmp.eq.s32.totalorder %v75, %v20
  %vm80 = vcmp.eq.s32.totalorder %v78, %v20
  %v81 = vsel %vm79, 1, 0
  %v82 = vsel %vm80, 1, 0
  %v83 = vcvt.s32.f32 %v81
  %v84 = vcvt.s32.f32 %v82
  %v85 = vadd.f32 %v71, %v83
  %v86 = vadd.f32 %v72, %v84
  %87 = vset.pattern.permute.xlu0 5
  %88 = vperm.xlu0 %87, %v17
  %v89 = vpop.permute.xlu0 %88
  %90 = vset.pattern.permute.xlu0 5
  %91 = vperm.xlu0 %90, %v18
  %v92 = vpop.permute.xlu0 %91
  %vm93 = vcmp.eq.s32.totalorder %v89, %v20
  %vm94 = vcmp.eq.s32.totalorder %v92, %v20
  %v95 = vsel %vm93, 1, 0
  %v96 = vsel %vm94, 1, 0
  %v97 = vcvt.s32.f32 %v95
  %v98 = vcvt.s32.f32 %v96
  %v99 = vadd.f32 %v85, %v97
  %v100 = vadd.f32 %v86, %v98
  %101 = vset.pattern.permute.xlu0 6
  %102 = vperm.xlu0 %101, %v17
  %v103 = vpop.permute.xlu0 %102
  %104 = vset.pattern.permute.xlu0 6
  %105 = vperm.xlu0 %104, %v18
  %v106 = vpop.permute.xlu0 %105
  %vm107 = vcmp.eq.s32.totalorder %v103, %v20
  %vm108 = vcmp.eq.s32.totalorder %v106, %v20
  %v109 = vsel %vm107, 1, 0
  %v110 = vsel %vm108, 1, 0
  %v111 = vcvt.s32.f32 %v109
  %v112 = vcvt.s32.f32 %v110
  %v113 = vadd.f32 %v99, %v111
  %v114 = vadd.f32 %v100, %v112
  %115 = vset.pattern.permute.xlu0 7
  %116 = vperm.xlu0 %115, %v17
  %v117 = vpop.permute.xlu0 %116
  %118 = vset.pattern.permute.xlu0 7
  %119 = vperm.xlu0 %118, %v18
  %v120 = vpop.permute.xlu0 %119
  %vm121 = vcmp.eq.s32.totalorder %v117, %v20
  %vm122 = vcmp.eq.s32.totalorder %v120, %v20
  %v123 = vsel %vm121, 1, 0
  %v124 = vsel %vm122, 1, 0
  %v125 = vcvt.s32.f32 %v123
  %v126 = vcvt.s32.f32 %v124
  %v127 = vadd.f32 %v113, %v125
  %v128 = vadd.f32 %v114, %v126
  %v129 = vmul.f32 %v127, 0.16666667
  %v130 = vmul.f32 %v128, 0.16666667
  %v131 = vld [vmem:[%s1] sm:$0xff]
  %v132 = vld [vmem:[%s1 + $0x8] sm:$0xff]
  %135 = vrot.lane.b32.xlu0 %v129, 64
  %v136 = vpop.permute.xlu0 %135
  %137 = vrot.lane.b32.xlu0 %v130, 64
  %v138 = vpop.permute.xlu0 %137
  %143 = vrot.lane.b32.xlu0 %v43, 96
  %v144 = vpop.permute.xlu0 %143
  %145 = vrot.lane.b32.xlu0 %v44, 96
  %v146 = vpop.permute.xlu0 %145
  %vm149 = vcmask 523264
  %v150 = vsel %vm149, %v31, %v136
  %v151 = vsel %vm149, %v32, %v138
  %vm152 = vcmask 785408
  %v153 = vsel %vm152, %v150, %v144
  %v154 = vsel %vm152, %v151, %v146
  %vm155 = vcmask 261120
  %v156 = vsel %vm155, %v131, 1.0
  %v157 = vsel %vm155, %v132, 1.0
  %v158 = vld [vmem:[%s2] sm:$0xff]
  %v159 = vld [vmem:[%s2 + $0x8] sm:$0xff]
  %v160 = vld [vmem:[%s2 + $0x10] sm:$0xff]
  %v161 = vld [vmem:[%s2 + $0x18] sm:$0xff]
  %v162 = vld [vmem:[%s2 + $0x20] sm:$0xff]
  %v163 = vld [vmem:[%s2 + $0x28] sm:$0xff]
  %v164 = vld [vmem:[%s2 + $0x30] sm:$0xff]
  %v165 = vld [vmem:[%s2 + $0x38] sm:$0xff]
  %v166 = vld [vmem:[%s2 + $0x40] sm:$0xff]
  %v167 = vld [vmem:[%s2 + $0x48] sm:$0xff]
  %v168 = vld [vmem:[%s2 + $0x50] sm:$0xff]
  %v169 = vld [vmem:[%s2 + $0x58] sm:$0xff]
  %v170 = vld [vmem:[%s2 + $0x60] sm:$0xff]
  %v171 = vld [vmem:[%s2 + $0x68] sm:$0xff]
  %v172 = vld [vmem:[%s2 + $0x70] sm:$0xff]
  %v173 = vld [vmem:[%s2 + $0x78] sm:$0xff]
  %v174 = vld [vmem:[%s2 + $0x80] sm:$0xff]
  %v175 = vld [vmem:[%s2 + $0x88] sm:$0xff]
  %v176 = vld [vmem:[%s2 + $0x90] sm:$0xff]
  %v177 = vld [vmem:[%s2 + $0x98] sm:$0xff]
  %v178 = vld [vmem:[%s2 + $0xa0] sm:$0x1]
  %vm179 = vcmask 269312
  %v181 = vsel %vm179, %v156, 0
  %v184 = vsel %vm179, %v157, 0
  %vm186 = vcmask 1040384
  %v188 = vsel %vm186, %v178, 0
  %190 = vmatpush.msra.mxu0 %v173
  %191 = vmatpush.msra.mxu0 %v172
  %192 = vmatpush.msra.mxu0 %v171
  %193 = vmatpush.msra.mxu0 %v170
  %194 = vmatpush.msra.mxu0 %v169
  %195 = vmatpush.msra.mxu0 %v168
  %196 = vmatpush.msra.mxu0 %v167
  %197 = vmatpush.msra.mxu0 %v166
  %198 = vmatpush.msra.mxu0 %v165
  %199 = vmatpush.msra.mxu0 %v164
  %200 = vmatpush.msra.mxu0 %v163
  %201 = vmatpush.msra.mxu0 %v162
  %202 = vmatpush.msra.mxu0 %v161
  %203 = vmatpush.msra.mxu0 %v160
  %204 = vmatpush.msra.mxu0 %v159
  %205 = vmatpush.msra.mxu0 %v158
  %206 = vmatmul.f32.gmra.mxu0 %v153
  %v207 = vpop.f32.mrf.mxu0
  %v208 = vadd.f32 0.0, %v207
  %209 = vmatmul.f32.gmra.mxu0 %v154
  %v210 = vpop.f32.mrf.mxu0
  %v211 = vadd.f32 0.0, %v210
  %212 = vdwg.mxu0
  %213 = vmatpush.msra.mxu0 0.0
  %214 = vmatpush.msra.mxu0 0.0
  %215 = vmatpush.msra.mxu0 0.0
  %216 = vmatpush.msra.mxu0 0.0
  %217 = vmatpush.msra.mxu0 0.0
  %218 = vmatpush.msra.mxu0 0.0
  %219 = vmatpush.msra.mxu0 0.0
  %220 = vmatpush.msra.mxu0 0.0
  %221 = vmatpush.msra.mxu0 0.0
  %222 = vmatpush.msra.mxu0 0.0
  %223 = vmatpush.msra.mxu0 0.0
  %224 = vmatpush.msra.mxu0 %v188
  %225 = vmatpush.msra.mxu0 %v177
  %226 = vmatpush.msra.mxu0 %v176
  %227 = vmatpush.msra.mxu0 %v175
  %228 = vmatpush.msra.mxu0 %v174
  %229 = vmatmul.f32.gmra.mxu0 %v181
  %v230 = vpop.f32.mrf.mxu0
  %v231 = vadd.f32 %v208, %v230
  %232 = vmatmul.f32.gmra.mxu0 %v184
  %v233 = vpop.f32.mrf.mxu0
  %v234 = vadd.f32 %v211, %v233
  %235 = vdwg.mxu0
  %v236 = vtanh.pop %v231
  %v237 = vtanh.pop %v234
  %v238 = vsel %vm152, %v236, 1.0
  %v239 = vsel %vm152, %v237, 1.0
  %v240 = vld [vmem:[%s3] sm:$0xff]
  %v241 = vld [vmem:[%s3 + $0x8] sm:$0xff]
  %v242 = vld [vmem:[%s3 + $0x10] sm:$0xff]
  %v243 = vld [vmem:[%s3 + $0x18] sm:$0xff]
  %v244 = vld [vmem:[%s3 + $0x20] sm:$0xff]
  %v245 = vld [vmem:[%s3 + $0x28] sm:$0xff]
  %v246 = vld [vmem:[%s3 + $0x30] sm:$0xff]
  %v247 = vld [vmem:[%s3 + $0x38] sm:$0xff]
  %v248 = vld [vmem:[%s3 + $0x40] sm:$0xff]
  %v249 = vld [vmem:[%s3 + $0x48] sm:$0xff]
  %v250 = vld [vmem:[%s3 + $0x50] sm:$0xff]
  %v251 = vld [vmem:[%s3 + $0x58] sm:$0xff]
  %v252 = vld [vmem:[%s3 + $0x60] sm:$0xff]
  %v253 = vld [vmem:[%s3 + $0x68] sm:$0xff]
  %v254 = vld [vmem:[%s3 + $0x70] sm:$0xff]
  %v255 = vld [vmem:[%s3 + $0x78] sm:$0xff]
  %v256 = vld [vmem:[%s3 + $0x80] sm:$0xff]
  %v257 = vld [vmem:[%s3 + $0x88] sm:$0xff]
  %v258 = vld [vmem:[%s3 + $0x90] sm:$0xff]
  %v259 = vld [vmem:[%s3 + $0x98] sm:$0xff]
  %v260 = vld [vmem:[%s3 + $0xa0] sm:$0xff]
  %v261 = vld [vmem:[%s3 + $0xa8] sm:$0xff]
  %v262 = vld [vmem:[%s3 + $0xb0] sm:$0xff]
  %v263 = vld [vmem:[%s3 + $0xb8] sm:$0xff]
  %v264 = vld [vmem:[%s3 + $0xc0] sm:$0xff]
  %v265 = vld [vmem:[%s3 + $0xc8] sm:$0xff]
  %v266 = vld [vmem:[%s3 + $0xd0] sm:$0xff]
  %v267 = vld [vmem:[%s3 + $0xd8] sm:$0xff]
  %v268 = vld [vmem:[%s3 + $0xe0] sm:$0xff]
  %v269 = vld [vmem:[%s3 + $0xe8] sm:$0xff]
  %v270 = vld [vmem:[%s3 + $0xf0] sm:$0xff]
  %v271 = vld [vmem:[%s3 + $0xf8] sm:$0xff]
  %v272 = vld [vmem:[%s3 + $0x100] sm:$0xff]
  %v273 = vld [vmem:[%s3 + $0x108] sm:$0xff]
  %v274 = vld [vmem:[%s3 + $0x110] sm:$0xff]
  %v275 = vld [vmem:[%s3 + $0x118] sm:$0xff]
  %v276 = vld [vmem:[%s3 + $0x120] sm:$0xff]
  %v277 = vld [vmem:[%s3 + $0x128] sm:$0xff]
  %v278 = vld [vmem:[%s3 + $0x130] sm:$0xff]
  %v279 = vld [vmem:[%s3 + $0x138] sm:$0xff]
  %v280 = vld [vmem:[%s3 + $0x140] sm:$0xff]
  %v281 = vld [vmem:[%s3 + $0x148] sm:$0xff]
  %v282 = vld [vmem:[%s3 + $0x150] sm:$0xff]
  %v283 = vld [vmem:[%s3 + $0x158] sm:$0xff]
  %v284 = vld [vmem:[%s3 + $0x160] sm:$0xff]
  %v285 = vld [vmem:[%s3 + $0x168] sm:$0xff]
  %v286 = vld [vmem:[%s3 + $0x170] sm:$0xff]
  %v287 = vld [vmem:[%s3 + $0x178] sm:$0xff]
  %v288 = vld [vmem:[%s3 + $0x180] sm:$0xff]
  %v289 = vld [vmem:[%s3 + $0x188] sm:$0xff]
  %v290 = vld [vmem:[%s3 + $0x190] sm:$0xff]
  %v291 = vld [vmem:[%s3 + $0x198] sm:$0xff]
  %v292 = vld [vmem:[%s3 + $0x1a0] sm:$0xff]
  %v293 = vld [vmem:[%s3 + $0x1a8] sm:$0xff]
  %v294 = vld [vmem:[%s3 + $0x1b0] sm:$0xff]
  %v295 = vld [vmem:[%s3 + $0x1b8] sm:$0xff]
  %v296 = vld [vmem:[%s3 + $0x1c0] sm:$0xff]
  %v297 = vld [vmem:[%s3 + $0x1c8] sm:$0xff]
  %v298 = vld [vmem:[%s3 + $0x1d0] sm:$0xff]
  %v299 = vld [vmem:[%s3 + $0x1d8] sm:$0xff]
  %v300 = vld [vmem:[%s3 + $0x1e0] sm:$0xff]
  %v301 = vld [vmem:[%s3 + $0x1e8] sm:$0xff]
  %v302 = vld [vmem:[%s3 + $0x1f0] sm:$0xff]
  %v303 = vld [vmem:[%s3 + $0x1f8] sm:$0xff]
  %v304 = vld [vmem:[%s3 + $0x200] sm:$0xff]
  %v305 = vld [vmem:[%s3 + $0x208] sm:$0xff]
  %v306 = vld [vmem:[%s3 + $0x210] sm:$0xff]
  %v307 = vld [vmem:[%s3 + $0x218] sm:$0xff]
  %v308 = vld [vmem:[%s3 + $0x220] sm:$0xff]
  %v309 = vld [vmem:[%s3 + $0x228] sm:$0xff]
  %v310 = vld [vmem:[%s3 + $0x230] sm:$0xff]
  %v311 = vld [vmem:[%s3 + $0x238] sm:$0xff]
  %v312 = vld [vmem:[%s3 + $0x240] sm:$0x1]
  %v313 = vld [vmem:[%s3 + $0x248] sm:$0x1]
  %v314 = vld [vmem:[%s3 + $0x250] sm:$0x1]
  %v315 = vld [vmem:[%s3 + $0x258] sm:$0x1]
  %v316 = vld [vmem:[%s3 + $0x260] sm:$0x1]
  %v317 = vld [vmem:[%s3 + $0x268] sm:$0x1]
  %vm318 = vcmask 793600
  %v320 = vsel %vm318, %v238, 0
  %v323 = vsel %vm318, %v239, 0
  %v326 = vsel %vm186, %v312, 0
  %v329 = vsel %vm186, %v313, 0
  %v332 = vsel %vm186, %v314, 0
  %v335 = vsel %vm186, %v315, 0
  %v338 = vsel %vm186, %v316, 0
  %v341 = vsel %vm186, %v317, 0
  %343 = vmatpush.msra.mxu0 0.0
  %344 = vmatpush.msra.mxu0 0.0
  %345 = vmatpush.msra.mxu0 0.0
  %346 = vmatpush.msra.mxu0 %v326
  %347 = vmatpush.msra.mxu0 %v306
  %348 = vmatpush.msra.mxu0 %v300
  %349 = vmatpush.msra.mxu0 %v294
  %350 = vmatpush.msra.mxu0 %v288
  %351 = vmatpush.msra.mxu0 %v282
  %352 = vmatpush.msra.mxu0 %v276
  %353 = vmatpush.msra.mxu0 %v270
  %354 = vmatpush.msra.mxu0 %v264
  %355 = vmatpush.msra.mxu0 %v258
  %356 = vmatpush.msra.mxu0 %v252
  %357 = vmatpush.msra.mxu0 %v246
  %358 = vmatpush.msra.mxu0 %v240
  %359 = vmatmul.f32.gmra.mxu0 %v320
  %v360 = vpop.f32.mrf.mxu0
  %v361 = vadd.f32 0.0, %v360
  %362 = vmatmul.f32.gmra.mxu0 %v323
  %v363 = vpop.f32.mrf.mxu0
  %v364 = vadd.f32 0.0, %v363
  %365 = vdwg.mxu0
  %366 = vmatpush.msra.mxu0 0.0
  %367 = vmatpush.msra.mxu0 0.0
  %368 = vmatpush.msra.mxu0 0.0
  %369 = vmatpush.msra.mxu0 %v329
  %370 = vmatpush.msra.mxu0 %v307
  %371 = vmatpush.msra.mxu0 %v301
  %372 = vmatpush.msra.mxu0 %v295
  %373 = vmatpush.msra.mxu0 %v289
  %374 = vmatpush.msra.mxu0 %v283
  %375 = vmatpush.msra.mxu0 %v277
  %376 = vmatpush.msra.mxu0 %v271
  %377 = vmatpush.msra.mxu0 %v265
  %378 = vmatpush.msra.mxu0 %v259
  %379 = vmatpush.msra.mxu0 %v253
  %380 = vmatpush.msra.mxu0 %v247
  %381 = vmatpush.msra.mxu0 %v241
  %382 = vmatmul.f32.gmra.mxu0 %v320
  %v383 = vpop.f32.mrf.mxu0
  %v384 = vadd.f32 0.0, %v383
  %385 = vmatmul.f32.gmra.mxu0 %v323
  %v386 = vpop.f32.mrf.mxu0
  %v387 = vadd.f32 0.0, %v386
  %388 = vdwg.mxu0
  %389 = vmatpush.msra.mxu0 0.0
  %390 = vmatpush.msra.mxu0 0.0
  %391 = vmatpush.msra.mxu0 0.0
  %392 = vmatpush.msra.mxu0 %v332
  %393 = vmatpush.msra.mxu0 %v308
  %394 = vmatpush.msra.mxu0 %v302
  %395 = vmatpush.msra.mxu0 %v296
  %396 = vmatpush.msra.mxu0 %v290
  %397 = vmatpush.msra.mxu0 %v284
  %398 = vmatpush.msra.mxu0 %v278
  %399 = vmatpush.msra.mxu0 %v272
  %400 = vmatpush.msra.mxu0 %v266
  %401 = vmatpush.msra.mxu0 %v260
  %402 = vmatpush.msra.mxu0 %v254
  %403 = vmatpush.msra.mxu0 %v248
  %404 = vmatpush.msra.mxu0 %v242
  %405 = vmatmul.f32.gmra.mxu0 %v320
  %v406 = vpop.f32.mrf.mxu0
  %v407 = vadd.f32 0.0, %v406
  %408 = vmatmul.f32.gmra.mxu0 %v323
  %v409 = vpop.f32.mrf.mxu0
  %v410 = vadd.f32 0.0, %v409
  %411 = vdwg.mxu0
  %412 = vmatpush.msra.mxu0 0.0
  %413 = vmatpush.msra.mxu0 0.0
  %414 = vmatpush.msra.mxu0 0.0
  %415 = vmatpush.msra.mxu0 %v335
  %416 = vmatpush.msra.mxu0 %v309
  %417 = vmatpush.msra.mxu0 %v303
  %418 = vmatpush.msra.mxu0 %v297
  %419 = vmatpush.msra.mxu0 %v291
  %420 = vmatpush.msra.mxu0 %v285
  %421 = vmatpush.msra.mxu0 %v279
  %422 = vmatpush.msra.mxu0 %v273
  %423 = vmatpush.msra.mxu0 %v267
  %424 = vmatpush.msra.mxu0 %v261
  %425 = vmatpush.msra.mxu0 %v255
  %426 = vmatpush.msra.mxu0 %v249
  %427 = vmatpush.msra.mxu0 %v243
  %428 = vmatmul.f32.gmra.mxu0 %v320
  %v429 = vpop.f32.mrf.mxu0
  %v430 = vadd.f32 0.0, %v429
  %431 = vmatmul.f32.gmra.mxu0 %v323
  %v432 = vpop.f32.mrf.mxu0
  %v433 = vadd.f32 0.0, %v432
  %434 = vdwg.mxu0
  %435 = vmatpush.msra.mxu0 0.0
  %436 = vmatpush.msra.mxu0 0.0
  %437 = vmatpush.msra.mxu0 0.0
  %438 = vmatpush.msra.mxu0 %v338
  %439 = vmatpush.msra.mxu0 %v310
  %440 = vmatpush.msra.mxu0 %v304
  %441 = vmatpush.msra.mxu0 %v298
  %442 = vmatpush.msra.mxu0 %v292
  %443 = vmatpush.msra.mxu0 %v286
  %444 = vmatpush.msra.mxu0 %v280
  %445 = vmatpush.msra.mxu0 %v274
  %446 = vmatpush.msra.mxu0 %v268
  %447 = vmatpush.msra.mxu0 %v262
  %448 = vmatpush.msra.mxu0 %v256
  %449 = vmatpush.msra.mxu0 %v250
  %450 = vmatpush.msra.mxu0 %v244
  %451 = vmatmul.f32.gmra.mxu0 %v320
  %v452 = vpop.f32.mrf.mxu0
  %v453 = vadd.f32 0.0, %v452
  %454 = vmatmul.f32.gmra.mxu0 %v323
  %v455 = vpop.f32.mrf.mxu0
  %v456 = vadd.f32 0.0, %v455
  %457 = vdwg.mxu0
  %458 = vmatpush.msra.mxu0 0.0
  %459 = vmatpush.msra.mxu0 0.0
  %460 = vmatpush.msra.mxu0 0.0
  %461 = vmatpush.msra.mxu0 %v341
  %462 = vmatpush.msra.mxu0 %v311
  %463 = vmatpush.msra.mxu0 %v305
  %464 = vmatpush.msra.mxu0 %v299
  %465 = vmatpush.msra.mxu0 %v293
  %466 = vmatpush.msra.mxu0 %v287
  %467 = vmatpush.msra.mxu0 %v281
  %468 = vmatpush.msra.mxu0 %v275
  %469 = vmatpush.msra.mxu0 %v269
  %470 = vmatpush.msra.mxu0 %v263
  %471 = vmatpush.msra.mxu0 %v257
  %472 = vmatpush.msra.mxu0 %v251
  %473 = vmatpush.msra.mxu0 %v245
  %474 = vmatmul.f32.gmra.mxu0 %v320
  %v475 = vpop.f32.mrf.mxu0
  %v476 = vadd.f32 0.0, %v475
  %477 = vmatmul.f32.gmra.mxu0 %v323
  %v478 = vpop.f32.mrf.mxu0
  %v479 = vadd.f32 0.0, %v478
  %480 = vdwg.mxu0
  %481 = vmax.xlane.f32.xlu0 %v361
  %v482 = vpop.xlane.xlu0 %481
  %483 = vmax.xlane.f32.xlu0 %v364
  %v484 = vpop.xlane.xlu0 %483
  %v485 = vsub.f32 %v361, %v482
  %v486 = vsub.f32 %v364, %v484
  %v487 = vmul.f32 %v485, 1.442695
  %v488 = vpow.pop %v487
  %v489 = vmul.f32 %v486, 1.442695
  %v490 = vpow.pop %v489
  %491 = vadd.xlane.f32.xlu0 %v488
  %v492 = vpop.xlane.xlu0 %491
  %493 = vadd.xlane.f32.xlu0 %v490
  %v494 = vpop.xlane.xlu0 %493
  %v495 = vrcp.pop %v492
  %v496 = vrcp.pop %v494
  %v497 = vmul.f32 %v488, %v495
  %v498 = vmul.f32 %v490, %v496
  %v499 = vadd.f32 %v497, 0.0
  %v500 = vadd.f32 %v498, 0.0
  %501 = vmax.xlane.f32.xlu0 %v384
  %v502 = vpop.xlane.xlu0 %501
  %503 = vmax.xlane.f32.xlu0 %v387
  %v504 = vpop.xlane.xlu0 %503
  %v505 = vsub.f32 %v384, %v502
  %v506 = vsub.f32 %v387, %v504
  %v507 = vmul.f32 %v505, 1.442695
  %v508 = vpow.pop %v507
  %v509 = vmul.f32 %v506, 1.442695
  %v510 = vpow.pop %v509
  %511 = vadd.xlane.f32.xlu0 %v508
  %v512 = vpop.xlane.xlu0 %511
  %513 = vadd.xlane.f32.xlu0 %v510
  %v514 = vpop.xlane.xlu0 %513
  %v515 = vrcp.pop %v512
  %v516 = vrcp.pop %v514
  %v517 = vmul.f32 %v508, %v515
  %v518 = vmul.f32 %v510, %v516
  %v519 = vadd.f32 %v517, 0.0
  %v520 = vadd.f32 %v518, 0.0
  %521 = vmax.xlane.f32.xlu0 %v407
  %v522 = vpop.xlane.xlu0 %521
  %523 = vmax.xlane.f32.xlu0 %v410
  %v524 = vpop.xlane.xlu0 %523
  %v525 = vsub.f32 %v407, %v522
  %v526 = vsub.f32 %v410, %v524
  %v527 = vmul.f32 %v525, 1.442695
  %v528 = vpow.pop %v527
  %v529 = vmul.f32 %v526, 1.442695
  %v530 = vpow.pop %v529
  %531 = vadd.xlane.f32.xlu0 %v528
  %v532 = vpop.xlane.xlu0 %531
  %533 = vadd.xlane.f32.xlu0 %v530
  %v534 = vpop.xlane.xlu0 %533
  %v535 = vrcp.pop %v532
  %v536 = vrcp.pop %v534
  %v537 = vmul.f32 %v528, %v535
  %v538 = vmul.f32 %v530, %v536
  %v539 = vadd.f32 %v499, %v537
  %v540 = vadd.f32 %v500, %v538
  %541 = vmax.xlane.f32.xlu0 %v430
  %v542 = vpop.xlane.xlu0 %541
  %543 = vmax.xlane.f32.xlu0 %v433
  %v544 = vpop.xlane.xlu0 %543
  %v545 = vsub.f32 %v430, %v542
  %v546 = vsub.f32 %v433, %v544
  %v547 = vmul.f32 %v545, 1.442695
  %v548 = vpow.pop %v547
  %v549 = vmul.f32 %v546, 1.442695
  %v550 = vpow.pop %v549
  %551 = vadd.xlane.f32.xlu0 %v548
  %v552 = vpop.xlane.xlu0 %551
  %553 = vadd.xlane.f32.xlu0 %v550
  %v554 = vpop.xlane.xlu0 %553
  %v555 = vrcp.pop %v552
  %v556 = vrcp.pop %v554
  %v557 = vmul.f32 %v548, %v555
  %v558 = vmul.f32 %v550, %v556
  %v559 = vadd.f32 %v519, %v557
  %v560 = vadd.f32 %v520, %v558
  %561 = vmax.xlane.f32.xlu0 %v453
  %v562 = vpop.xlane.xlu0 %561
  %563 = vmax.xlane.f32.xlu0 %v456
  %v564 = vpop.xlane.xlu0 %563
  %v565 = vsub.f32 %v453, %v562
  %v566 = vsub.f32 %v456, %v564
  %v567 = vmul.f32 %v565, 1.442695
  %v568 = vpow.pop %v567
  %v569 = vmul.f32 %v566, 1.442695
  %v570 = vpow.pop %v569
  %571 = vadd.xlane.f32.xlu0 %v568
  %v572 = vpop.xlane.xlu0 %571
  %573 = vadd.xlane.f32.xlu0 %v570
  %v574 = vpop.xlane.xlu0 %573
  %v575 = vrcp.pop %v572
  %v576 = vrcp.pop %v574
  %v577 = vmul.f32 %v568, %v575
  %v578 = vmul.f32 %v570, %v576
  %v579 = vadd.f32 %v539, %v577
  %v580 = vadd.f32 %v540, %v578
  %581 = vmax.xlane.f32.xlu0 %v476
  %v582 = vpop.xlane.xlu0 %581
  %583 = vmax.xlane.f32.xlu0 %v479
  %v584 = vpop.xlane.xlu0 %583
  %v585 = vsub.f32 %v476, %v582
  %v586 = vsub.f32 %v479, %v584
  %v587 = vmul.f32 %v585, 1.442695
  %v588 = vpow.pop %v587
  %v589 = vmul.f32 %v586, 1.442695
  %v590 = vpow.pop %v589
  %591 = vadd.xlane.f32.xlu0 %v588
  %v592 = vpop.xlane.xlu0 %591
  %593 = vadd.xlane.f32.xlu0 %v590
  %v594 = vpop.xlane.xlu0 %593
  %v595 = vrcp.pop %v592
  %v596 = vrcp.pop %v594
  %v597 = vmul.f32 %v588, %v595
  %v598 = vmul.f32 %v590, %v596
  %v599 = vadd.f32 %v559, %v597
  %v600 = vadd.f32 %v560, %v598
  %vm601 = vcmp.ge.s32.totalorder %v20, 1
  %v602 = vsel %vm601, %v579, -inf
  %v603 = vsel %vm601, %v580, -inf
  %604 = vmax.xlane.f32.xlu0 %v602
  %v605 = vpop.xlane.xlu0 %604
  %606 = vmax.xlane.f32.xlu0 %v603
  %v607 = vpop.xlane.xlu0 %606
  %vm608 = vcmp.eq.f32.partialorder %v602, %v605
  %vm609 = vcmp.eq.f32.partialorder %v603, %v607
  %v610 = vsel %vm608, %v20, 128
  %v611 = vsel %vm609, %v20, 128
  %v612 = vand.u32 %v610, 65535
  %v613 = vshra.s32 %v610, 16
  %v614 = vcvt.s32.f32 %v612
  %v615 = vcvt.s32.f32 %v613
  %616 = vmin.xlane.f32.xlu0 %v615
  %v617 = vpop.xlane.xlu0 %616
  %vm618 = vcmp.eq.f32.partialorder %v615, %v617
  %v619 = vsel %vm618, %v614, inf
  %620 = vmin.xlane.f32.xlu0 %v619
  %v621 = vpop.xlane.xlu0 %620
  %v622 = vcvt.f32.s32 %v621
  %v623 = vcvt.f32.s32 %v617
  %v624 = vshll.u32 %v623, 16
  %v625 = vadd.s32 %v624, %v622
  %v626 = vand.u32 %v611, 65535
  %v627 = vshra.s32 %v611, 16
  %v628 = vcvt.s32.f32 %v626
  %v629 = vcvt.s32.f32 %v627
  %630 = vmin.xlane.f32.xlu0 %v629
  %v631 = vpop.xlane.xlu0 %630
  %vm632 = vcmp.eq.f32.partialorder %v629, %v631
  %v633 = vsel %vm632, %v628, inf
  %634 = vmin.xlane.f32.xlu0 %v633
  %v635 = vpop.xlane.xlu0 %634
  %v636 = vcvt.f32.s32 %v635
  %v637 = vcvt.f32.s32 %v631
  %v638 = vshll.u32 %v637, 16
  %v639 = vadd.s32 %v638, %v636
  %v640 = vsel %vm601, %v599, -inf
  %v641 = vsel %vm601, %v600, -inf
  %642 = vmax.xlane.f32.xlu0 %v640
  %v643 = vpop.xlane.xlu0 %642
  %644 = vmax.xlane.f32.xlu0 %v641
  %v645 = vpop.xlane.xlu0 %644
  %vm646 = vcmp.eq.f32.partialorder %v640, %v643
  %vm647 = vcmp.eq.f32.partialorder %v641, %v645
  %v648 = vsel %vm646, %v20, 128
  %v649 = vsel %vm647, %v20, 128
  %v650 = vand.u32 %v648, 65535
  %v651 = vshra.s32 %v648, 16
  %v652 = vcvt.s32.f32 %v650
  %v653 = vcvt.s32.f32 %v651
  %654 = vmin.xlane.f32.xlu0 %v653
  %v655 = vpop.xlane.xlu0 %654
  %vm656 = vcmp.eq.f32.partialorder %v653, %v655
  %v657 = vsel %vm656, %v652, inf
  %658 = vmin.xlane.f32.xlu0 %v657
  %v659 = vpop.xlane.xlu0 %658
  %v660 = vcvt.f32.s32 %v659
  %v661 = vcvt.f32.s32 %v655
  %v662 = vshll.u32 %v661, 16
  %v663 = vadd.s32 %v662, %v660
  %v664 = vand.u32 %v649, 65535
  %v665 = vshra.s32 %v649, 16
  %v666 = vcvt.s32.f32 %v664
  %v667 = vcvt.s32.f32 %v665
  %668 = vmin.xlane.f32.xlu0 %v667
  %v669 = vpop.xlane.xlu0 %668
  %vm670 = vcmp.eq.f32.partialorder %v667, %v669
  %v671 = vsel %vm670, %v666, inf
  %672 = vmin.xlane.f32.xlu0 %v671
  %v673 = vpop.xlane.xlu0 %672
  %v674 = vcvt.f32.s32 %v673
  %v675 = vcvt.f32.s32 %v669
  %v676 = vshll.u32 %v675, 16
  %v677 = vadd.s32 %v676, %v674
  %vm678 = vcmask 7168
  %v679 = vsel %vm678, %v625, %v663
  %v680 = vsel %vm678, %v639, %v677
  %vm681 = vcmask 15360
  %682 = vst.msk [vmem:[%s4] sm:$0xff] %vm681, %v679
  %683 = vst.msk [vmem:[%s4 + $0x8] sm:$0xff] %vm681, %v680
  // Predicated region
  $region18: #{ensemble_forward.1} parent=0 // pred_check
    _
  $region19: #{ensemble_forward.1} parent=0 // pred_check_branch
    %685 = sbr.rel (0) target = $region21
  $region20: #{ensemble_forward.1} parent=0 // pred_region
    _
  $region21: #{ensemble_forward.1} parent=0 // pred_fallthru
    _
  // Predicated region
  $region22: #{ensemble_forward.1} parent=0 // pred_check
    _
  $region23: #{ensemble_forward.1} parent=0 // pred_check_branch
    %687 = sbr.rel (0) target = $region25
  $region24: #{ensemble_forward.1} parent=0 // pred_region
    _
  $region25: #{ensemble_forward.1} parent=0 // pred_fallthru
    _

</llo_original>
